<compile_context>
chip_gen: v5e
topology: v5e:2x2
jax: 0.10.0
libtpu: 0.0.40
codegen_flags: <defaults>
</compile_context>

<pallas_src>
import math

import jax
import jax.numpy as jnp
from jax.experimental import pallas as pl
from jax.experimental.pallas import tpu as pltpu


def _round_up(x: int, m: int) -> int:
    return ((x + m - 1) // m) * m


def _multi_embed_kernel(fidx_ref, tab_ref, out_ref):
    # fidx_ref: (Bt, C)      int32 -- pre-offset fused indices (-1 == invalid)
    # tab_ref : (C*Kp, C*D)  f32   -- block-diagonal stacked embedding tables
    # out_ref : (Bt, C*D)          -- lane-dense fused output
    fidx = fidx_ref[...]                                 # (Bt, C)
    bt, c = fidx.shape
    ckp = tab_ref.shape[0]

    # 2-D fused one-hot: onehot[b, j] = any_c(fidx[b, c] == j).
    # Fused columns of different categories are disjoint by construction and
    # invalid indices are -1 (never match), so this is an exact one-hot.
    col = jax.lax.broadcasted_iota(jnp.int32, (bt, ckp), 1)
    hit = col == fidx[:, 0:1]
    for cc in range(1, c):
        hit = hit | (col == fidx[:, cc:cc + 1])
    onehot = hit.astype(jnp.float32)                     # (Bt, C*Kp)

    # Single MXU matmul against the VMEM-resident block-diagonal table.
    out_ref[...] = jnp.dot(
        onehot, tab_ref[...], preferred_element_type=jnp.float32
    ).astype(out_ref.dtype)


def _vmem_budget_bytes(b_tile: int, c: int, d: int, kp: int) -> int:
    lanes = lambda n: _round_up(n, 128)
    subs = lambda n: _round_up(n, 8)
    idx_blk = subs(b_tile) * lanes(c) * 4 * 2        # double-buffered indices
    out_blk = subs(b_tile) * lanes(c * d) * 4 * 2    # double-buffered output
    tab = subs(c * kp) * lanes(c * d) * 4 * 2        # table (2 bufs, constant map)
    onehot = subs(b_tile) * lanes(c * kp) * 4 * 3    # iota/compare/one-hot temps
    return idx_blk + out_blk + tab + onehot


class MultiEmbeddings:
    """JAX/Pallas port of the PyTorch MultiEmbeddings module."""

    def __init__(self, choices_per_category, embedding_dim, do_flatten=False,
                 key=None, b_tile_cap=8192, out_dtype=jnp.float32):
        self.choices_per_category = list(choices_per_category)
        self.embedding_dim = int(embedding_dim)
        self.do_flatten = bool(do_flatten)
        self.b_tile_cap = int(b_tile_cap)
        self.out_dtype = out_dtype

        if key is None:
            key = jax.random.PRNGKey(0)
        keys = jax.random.split(key, len(self.choices_per_category))
        # nn.Embedding default init: weights ~ N(0, 1), float32.
        self.tables = [
            jax.random.normal(k, (c, self.embedding_dim), dtype=jnp.float32)
            for k, c in zip(keys, self.choices_per_category)
        ]

        C = len(self.choices_per_category)
        D = self.embedding_dim
        # Pad per-category row count only to the 8-sublane alignment (no extra
        # padding of the contraction dim), then build ONE block-diagonal table
        #   tbl[c*Kp + k, c*D + d] = tables[c][k, d]   (zeros elsewhere)
        kp = _round_up(max(self.choices_per_category), 8)
        self.kp = kp
        tbl = jnp.zeros((C * kp, C * D), dtype=jnp.float32)
        for c, t in enumerate(self.tables):
            tbl = tbl.at[c * kp: c * kp + t.shape[0], c * D:(c + 1) * D].set(t)
        self.table_blockdiag = tbl
        # Fused-column offsets: category c occupies columns [c*Kp, (c+1)*Kp).
        self._offsets = jnp.arange(C, dtype=jnp.int32) * kp

    def __call__(self, indices):
        C = len(self.choices_per_category)
        D = self.embedding_dim
        kp = self.kp
        assert indices.shape[-1] == C, "last dim must equal num_categories"
        batch_shape = indices.shape[:-1]
        B = int(math.prod(batch_shape)) if batch_shape else 1

        idx = indices.reshape(B, C).astype(jnp.int32)            # lane-dense
        # Pre-offset into fused column space; out-of-range indices -> -1 so
        # they never match any column (all-zero embedding row instead of
        # aliasing into a neighboring category's table).
        fidx = jnp.where((idx >= 0) & (idx < kp), idx + self._offsets,
                         jnp.int32(-1))

        # Batch tiling with minimal tail padding: split B into n_tiles roughly
        # equal tiles rounded to the 8-sublane alignment.
        n_tiles = -(-B // self.b_tile_cap)                       # ceil
        b_tile = _round_up(-(-B // n_tiles), 8)
        Bp = b_tile * n_tiles
        if Bp != B:
            fidx = jnp.pad(fidx, ((0, Bp - B), (0, 0)),
                           constant_values=jnp.int32(-1))

        # VMEM budget for the chosen tile (headroom included), clamped so it
        # is safe on all generations (v7x physical VMEM is 64 MiB).
        vmem_limit = min(max(int(_vmem_budget_bytes(b_tile, C, D, kp) * 1.25)
                             + (2 << 20), 32 << 20), 56 << 20)

        out = pl.pallas_call(
            _multi_embed_kernel,
            out_shape=jax.ShapeDtypeStruct((Bp, C * D), self.out_dtype),
            grid=(n_tiles,),
            in_specs=[
                # fused indices for this batch tile, (Bt, C)
                pl.BlockSpec((b_tile, C), lambda i: (i, 0)),
                # block-diagonal table: constant index_map -> DMA'd once,
                # stays VMEM-resident across all batch tiles
                pl.BlockSpec((C * kp, C * D), lambda i: (0, 0)),
            ],
            out_specs=pl.BlockSpec((b_tile, C * D), lambda i: (i, 0)),
            compiler_params=pltpu.CompilerParams(
                dimension_semantics=("parallel",),
                vmem_limit_bytes=vmem_limit),
        )(fidx, self.table_blockdiag)

        out = out[:B]                                            # (B, C*D)
        if self.do_flatten:
            return out.reshape(*batch_shape, C * D)
        # Free reshape: column c*D + d of the fused output is exactly
        # (category c, embedding dim d), matching the PyTorch layout.
        return out.reshape(*batch_shape, C, D)


if __name__ == "__main__":
    choices = [5, 7, 3, 9]          # num_categories = 4
    embedding_dim = 32              # C*D = 128 -> fully lane-dense output
    batch_shape = (2, 8)

    key = jax.random.PRNGKey(0)
    k_param, k_idx = jax.random.split(key)

    module = MultiEmbeddings(choices, embedding_dim, do_flatten=False,
                             key=k_param)

    # deterministic multi-discrete input: shape (*, num_categories)
    maxes = jnp.array(choices, dtype=jnp.int32)
    u = jax.random.uniform(k_idx, (*batch_shape, len(choices)))
    x = jnp.clip(jnp.floor(u * maxes).astype(jnp.int32), 0, maxes - 1)

    out = jax.block_until_ready(module(x))
    assert out.shape == (*batch_shape, len(choices), embedding_dim), out.shape

    # pure-JAX reference (per-category table lookup, stacked on dim=-2)
    ref = jnp.stack(
        [module.tables[c][x[..., c]] for c in range(len(choices))], axis=-2
    )
    assert jnp.allclose(out, ref, atol=1e-5), float(jnp.max(jnp.abs(out - ref)))

    # do_flatten=True variant (same tables, flattened last two dims)
    module_f = MultiEmbeddings(choices, embedding_dim, do_flatten=True,
                               key=k_param)
    out_f = jax.block_until_ready(module_f(x))
    assert out_f.shape == (*batch_shape, len(choices) * embedding_dim)
    assert jnp.allclose(out_f, ref.reshape(*batch_shape, -1), atol=1e-5)

    print("KERNEL_OK")
</pallas_src>

<mosaic_0001>
module attributes {stable_mosaic.version = 11 : i64} {
  func.func @_multi_embed_kernel(%arg0: i32, %arg1: memref<16x4xi32, #tpu.memory_space<vmem>>, %arg2: memref<64x128xf32, #tpu.memory_space<vmem>>, %arg3: memref<16x128xf32, #tpu.memory_space<vmem>>) attributes {dimension_semantics = [#tpu.dimension_semantics<parallel>], iteration_bounds = array<i64: 1>, scalar_prefetch = 0 : i64, scratch_operands = 0 : i64, tpu.core_type = #tpu.core_type<tc>, window_params = [{transform_indices = @transform_0, window_bounds = array<i64: 16, 4>}, {pipeline_mode = #tpu.pipeline_mode<synchronous>, transform_indices = @transform_1, window_bounds = array<i64: 64, 128>}, {transform_indices = @transform_2, window_bounds = array<i64: 16, 128>}]} {
    %c0 = arith.constant 0 : index
    %c0_0 = arith.constant 0 : index
    %0 = vector.load %arg1[%c0, %c0_0] : memref<16x4xi32, #tpu.memory_space<vmem>>, vector<16x4xi32>
    %1 = tpu.iota {dimensions = array<i32: 1>} : vector<16x64xi32>
    %2 = vector.extract_strided_slice %0 {offsets = [0, 0], sizes = [16, 1], strides = [1, 1]} : vector<16x4xi32> to vector<16x1xi32>
    %3 = vector.broadcast %2 : vector<16x1xi32> to vector<16x64xi32>
    %4 = arith.cmpi eq, %1, %3 : vector<16x64xi32>
    %5 = vector.extract_strided_slice %0 {offsets = [0, 1], sizes = [16, 1], strides = [1, 1]} : vector<16x4xi32> to vector<16x1xi32>
    %6 = vector.broadcast %5 : vector<16x1xi32> to vector<16x64xi32>
    %7 = arith.cmpi eq, %1, %6 : vector<16x64xi32>
    %8 = arith.ori %4, %7 : vector<16x64xi1>
    %9 = vector.extract_strided_slice %0 {offsets = [0, 2], sizes = [16, 1], strides = [1, 1]} : vector<16x4xi32> to vector<16x1xi32>
    %10 = vector.broadcast %9 : vector<16x1xi32> to vector<16x64xi32>
    %11 = arith.cmpi eq, %1, %10 : vector<16x64xi32>
    %12 = arith.ori %8, %11 : vector<16x64xi1>
    %13 = vector.extract_strided_slice %0 {offsets = [0, 3], sizes = [16, 1], strides = [1, 1]} : vector<16x4xi32> to vector<16x1xi32>
    %14 = vector.broadcast %13 : vector<16x1xi32> to vector<16x64xi32>
    %15 = arith.cmpi eq, %1, %14 : vector<16x64xi32>
    %16 = arith.ori %12, %15 : vector<16x64xi1>
    %17 = arith.extui %16 : vector<16x64xi1> to vector<16x64xi32>
    %18 = arith.sitofp %17 : vector<16x64xi32> to vector<16x64xf32>
    %c0_1 = arith.constant 0 : index
    %c0_2 = arith.constant 0 : index
    %19 = vector.load %arg2[%c0_1, %c0_2] : memref<64x128xf32, #tpu.memory_space<vmem>>, vector<64x128xf32>
    %cst = arith.constant dense<0.000000e+00> : vector<16x128xf32>
    %20 = tpu.matmul %18, %19, %cst {dimension_numbers = #tpu.dot_dimension_numbers<[1], [0], [0], [1], [0, 0, 1, 1], [], []>} : vector<16x64xf32>, vector<64x128xf32>, vector<16x128xf32> -> vector<16x128xf32>
    %c0_3 = arith.constant 0 : index
    %c0_4 = arith.constant 0 : index
    %21 = vector.load %arg3[%c0_3, %c0_4] : memref<16x128xf32, #tpu.memory_space<vmem>>, vector<16x128xf32>
    tpu.vector_store %arg3[%c0_3, %c0_4], %20 {strides = array<i32>} : memref<16x128xf32, #tpu.memory_space<vmem>>, vector<16x128xf32>,
    return
  }
  func.func @transform_0(%arg0: i32) -> (i32, i32) {
    %c0_i32 = arith.constant 0 : i32
    %c0_i32_0 = arith.constant 0 : i32
    return %arg0, %c0_i32 : i32, i32
  }
  func.func @transform_1(%arg0: i32) -> (i32, i32) {
    %c0_i32 = arith.constant 0 : i32
    %c0_i32_0 = arith.constant 0 : i32
    %c0_i32_1 = arith.constant 0 : i32
    return %c0_i32, %c0_i32_0 : i32, i32
  }
  func.func @transform_2(%arg0: i32) -> (i32, i32) {
    %c0_i32 = arith.constant 0 : i32
    %c0_i32_0 = arith.constant 0 : i32
    return %arg0, %c0_i32 : i32, i32
  }
}

</mosaic_0001>

<llo_original>
// kernel: tpu_custom_call.1
$region0: #{tpu_custom_call.1}
  #allocation0 [shape = 'u32[]', space=smem, size = 0x4, offset = 0x4, fixed_abs, tag = 'smem constant byte address 0x4 - core index']
  #allocation1 [shape = 'u32[72,128]{1,0:T(1,128)}', space=vmem, size = 0x9000, scoped, tag = 'internal scratch']
  %s0 = inlined_call_operand.vmem [shape: s32[16,4], index: 0, kind: input, shape index: {}]
  %s1 = inlined_call_operand.hbm [shape: f32[64,128], index: 1, kind: input, shape index: {}]
  %s2 = inlined_call_operand.hbm [shape: f32[16,128], index: 2, kind: output, shape index: {}]
  %s3 = sld [smem:[#allocation0]]
  $region22: #{tpu_custom_call.1} parent=0
    _
  %s5 = ssub.s32 1, %s3
  %s6 = scalar_select 0, %s5, %s3
  $region1: #{tpu_custom_call.1} parent=0
    #allocation2 [shape = 'u8[32768]{0}', space=vmem, size = 0x8000, scoped, tag = 'input window, operand 1, single buffered']
    #allocation3 [shape = 's32[1]{0}', space=sflag, size = 0x4, scoped, tag = 'scoped memory for tpu_custom_call.1']
    #allocation4 [shape = 's32[1]{0}', space=sflag, size = 0x4, scoped, tag = 'scoped memory for tpu_custom_call.1']
    #allocation5 [shape = 'u8[8192]{0}', space=vmem, size = 0x2000, scoped, tag = 'output window, operand 0, single buffered']
    %7 = vsyncpa [#allocation3], 0
    %8 = vsyncpa [#allocation4], 0
    // Predicated region
    $region2: #{tpu_custom_call.1} parent=1 // pred_check
      _
    $region3: #{tpu_custom_call.1} parent=1 // pred_check_branch
      %10 = sbr.rel (0) target = $region5
    $region4: #{tpu_custom_call.1} parent=1 // pred_region
      _
    $region5: #{tpu_custom_call.1} parent=1 // pred_fallthru
      _
    // Predicated region
    $region6: #{tpu_custom_call.1} parent=1 // pred_check
      _
    $region7: #{tpu_custom_call.1} parent=1 // pred_check_branch
      %12 = sbr.rel (0) target = $region9
    $region8: #{tpu_custom_call.1} parent=1 // pred_region
      %14 = vsyncadd [#allocation3], 0
      %s15 = sshll.u32 %s1, 4
      %s16 = int_to_ptr.hbm [resolvable:$true] %s15
      %s17 = sshll.u32 [#allocation2], 4
      %s18 = int_to_ptr.vmem [resolvable:$true] %s17
      %23 = dma.hbm_to_vmem [thread:$0]  %s16, 1024, %s18, [#allocation3], 128, 128, 8
    $region9: #{tpu_custom_call.1} parent=1 // pred_fallthru
      _
    // Predicated region
    $region10: #{tpu_custom_call.1} parent=1 // pred_check
      _
    $region11: #{tpu_custom_call.1} parent=1 // pred_check_branch
      %25 = sbr.rel (0) target = $region13
    $region12: #{tpu_custom_call.1} parent=1 // pred_region
      %27 = dma.done [#allocation3], 1024
    $region13: #{tpu_custom_call.1} parent=1 // pred_fallthru
      _
    %v28 = vld [vmem:[%s0] sm:$0xff]
    %v29 = vld [vmem:[%s0 + $0x8] sm:$0xff]
    %v30 = vlaneseq
    %v31 = vand.u32 %v30, 127
    %32 = vset.pattern.permute.xlu0 0
    %33 = vperm.xlu0 %32, %v28
    %v34 = vpop.permute.xlu0 %33
    %35 = vset.pattern.permute.xlu0 0
    %36 = vperm.xlu0 %35, %v29
    %v37 = vpop.permute.xlu0 %36
    %vm38 = vcmp.eq.s32.totalorder %v31, %v34
    %vm39 = vcmp.eq.s32.totalorder %v31, %v37
    %40 = vset.pattern.permute.xlu0 1
    %41 = vperm.xlu0 %40, %v28
    %v42 = vpop.permute.xlu0 %41
    %43 = vset.pattern.permute.xlu0 1
    %44 = vperm.xlu0 %43, %v29
    %v45 = vpop.permute.xlu0 %44
    %vm46 = vcmp.eq.s32.totalorder %v31, %v42
    %vm47 = vcmp.eq.s32.totalorder %v31, %v45
    %vm48 = vmor %vm38, %vm46
    %vm49 = vmor %vm39, %vm47
    %50 = vset.pattern.permute.xlu0 2
    %51 = vperm.xlu0 %50, %v28
    %v52 = vpop.permute.xlu0 %51
    %53 = vset.pattern.permute.xlu0 2
    %54 = vperm.xlu0 %53, %v29
    %v55 = vpop.permute.xlu0 %54
    %vm56 = vcmp.eq.s32.totalorder %v31, %v52
    %vm57 = vcmp.eq.s32.totalorder %v31, %v55
    %vm58 = vmor %vm48, %vm56
    %vm59 = vmor %vm49, %vm57
    %60 = vset.pattern.permute.xlu0 3
    %61 = vperm.xlu0 %60, %v28
    %v62 = vpop.permute.xlu0 %61
    %63 = vset.pattern.permute.xlu0 3
    %64 = vperm.xlu0 %63, %v29
    %v65 = vpop.permute.xlu0 %64
    %vm66 = vcmp.eq.s32.totalorder %v31, %v62
    %vm67 = vcmp.eq.s32.totalorder %v31, %v65
    %vm68 = vmor %vm58, %vm66
    %vm69 = vmor %vm59, %vm67
    %v70 = vsel %vm68, 1, 0
    %v71 = vsel %vm69, 1, 0
    %v72 = vcvt.s32.f32 %v70
    %v73 = vcvt.s32.f32 %v71
    %v74 = vld [vmem:[#allocation2] sm:$0xff]
    %v75 = vld [vmem:[#allocation2 + $0x8] sm:$0xff]
    %v76 = vld [vmem:[#allocation2 + $0x10] sm:$0xff]
    %v77 = vld [vmem:[#allocation2 + $0x18] sm:$0xff]
    %v78 = vld [vmem:[#allocation2 + $0x20] sm:$0xff]
    %v79 = vld [vmem:[#allocation2 + $0x28] sm:$0xff]
    %v80 = vld [vmem:[#allocation2 + $0x30] sm:$0xff]
    %v81 = vld [vmem:[#allocation2 + $0x38] sm:$0xff]
    %vm82 = vcmask 523264
    %v84 = vsel %vm82, %v72, 0
    %v87 = vsel %vm82, %v73, 0
    %89 = vmatpush.msra.mxu0 0.0
    %90 = vmatpush.msra.mxu0 0.0
    %91 = vmatpush.msra.mxu0 0.0
    %92 = vmatpush.msra.mxu0 0.0
    %93 = vmatpush.msra.mxu0 0.0
    %94 = vmatpush.msra.mxu0 0.0
    %95 = vmatpush.msra.mxu0 0.0
    %96 = vmatpush.msra.mxu0 0.0
    %97 = vmatpush.msra.mxu0 %v81
    %98 = vmatpush.msra.mxu0 %v80
    %99 = vmatpush.msra.mxu0 %v79
    %100 = vmatpush.msra.mxu0 %v78
    %101 = vmatpush.msra.mxu0 %v77
    %102 = vmatpush.msra.mxu0 %v76
    %103 = vmatpush.msra.mxu0 %v75
    %104 = vmatpush.msra.mxu0 %v74
    %105 = vmatmul.f32.gmra.mxu0 %v84
    %v106 = vpop.f32.mrf.mxu0
    %v107 = vadd.f32 0.0, %v106
    %108 = vmatmul.f32.gmra.mxu0 %v87
    %v109 = vpop.f32.mrf.mxu0
    %v110 = vadd.f32 0.0, %v109
    %111 = vdwg.mxu0
    %112 = vst [vmem:[#allocation5] sm:$0xff] %v107
    %113 = vst [vmem:[#allocation5 + $0x8] sm:$0xff] %v110
    // Predicated region
    $region14: #{tpu_custom_call.1} parent=1 // pred_check
      _
    $region15: #{tpu_custom_call.1} parent=1 // pred_check_branch
      %115 = sbr.rel (0) target = $region17
    $region16: #{tpu_custom_call.1} parent=1 // pred_region
      %117 = vsyncadd [#allocation4], 0
      %s118 = sshll.u32 [#allocation5], 4
      %s119 = int_to_ptr.vmem [resolvable:$true] %s118
      %s120 = sshll.u32 %s2, 4
      %s121 = int_to_ptr.hbm [resolvable:$true] %s120
      %126 = dma.vmem_to_hbm [thread:$0]  %s119, 256, %s121, [#allocation4], 128, 128, 8
    $region17: #{tpu_custom_call.1} parent=1 // pred_fallthru
      _
    // Predicated region
    $region18: #{tpu_custom_call.1} parent=1 // pred_check
      _
    $region19: #{tpu_custom_call.1} parent=1 // pred_check_branch
      %128 = sbr.rel (0) target = $region21
    $region20: #{tpu_custom_call.1} parent=1 // pred_region
      %130 = dma.done [#allocation4], 256
    $region21: #{tpu_custom_call.1} parent=1 // pred_fallthru
      _
    %131 = vsyncpa [#allocation3], 1
    %132 = vsyncpa [#allocation4], 1

</llo_original>
